<compile_context>
chip_gen: v5e
topology: v5e:2x2
jax: 0.10.0
libtpu: 0.0.40
codegen_flags: <defaults>
</compile_context>

<pallas_src>
import functools

import numpy as np
import jax
import jax.numpy as jnp
from jax import lax
from jax.experimental import pallas as pl
from jax.experimental.pallas import tpu as pltpu


# ----------------------------- small helpers ------------------------------- #

_CompilerParams = getattr(pltpu, "CompilerParams", None) or getattr(
    pltpu, "TPUCompilerParams", None)
_SMEM = pltpu.MemorySpace.SMEM


def _detect_caps():
    """Per-chip-generation tile caps and scoped-VMEM limit."""
    kind = ""
    try:
        kind = jax.devices()[0].device_kind.lower()
    except Exception:
        pass
    if "v5" in kind or "v6" in kind:
        # 128 MiB physical VMEM: big tiles, high scoped limit.
        return {"vmem": 100 * 1024 * 1024, "row_cap": 512,
                "gat_t_cap": 512, "gat_s_cap": 1024}
    # v7x (64 MiB physical VMEM) and unknown chips: conservative sizing.
    return {"vmem": 48 * 1024 * 1024, "row_cap": 256,
            "gat_t_cap": 256, "gat_s_cap": 512}


_CAPS = _detect_caps()


def _compiler_params(dims=None, vmem_limit_bytes=None):
    if _CompilerParams is None:
        return None
    kw = {}
    if dims:
        kw["dimension_semantics"] = tuple(dims)
    if vmem_limit_bytes is not None:
        kw["vmem_limit_bytes"] = vmem_limit_bytes
    return _CompilerParams(**kw)


def _row_tile(v, cap=512):
    """Full extent if small, else the largest tile (>=128) dividing v."""
    if v <= cap:
        return v
    t = cap
    while t >= 128:
        if v % t == 0:
            return t
        t //= 2
    # TODO(synk): large V not divisible by 128 falls back to one full-extent
    # block (no pipelining); pad V upstream if that case matters.
    return v


def _bf16(x):
    return x.astype(jnp.bfloat16)


def _matmul_t(x, w):
    """x:(N,K) @ w:(M,K)^T -> (N,M); bf16 operands, f32 accumulation on MXU."""
    return lax.dot_general(_bf16(x), _bf16(w), (((1,), (1,)), ((), ())),
                           preferred_element_type=jnp.float32)


def _graph_ln_stats(z, eps):
    """Global graph-mode LayerNorm stats (torch_geometric, batch=None):
    centered over ALL elements; out = zc / (std_biased + eps) * w + b.
    Cheap plain-JAX global reduction (glue) feeding SMEM scalars."""
    m = jnp.mean(z)
    v = jnp.mean(jnp.square(z - m))
    inv = 1.0 / (jnp.sqrt(v) + eps)
    return jnp.stack([m, inv]).reshape(1, 2).astype(jnp.float32)


# ----------------------------- Pallas kernels ------------------------------ #

def _pre_mlp_kernel(x_ref, tf_ref, twt_ref, tb_ref, w1x_ref, w1t_ref, b1_ref,
                    w2_ref, b2_ref, o_ref):
    # Fused: time-embed linear (+swish), concat-with-x (expressed as two
    # matmuls), pre1 (+relu), pre2 (+relu).
    tf = tf_ref[...]                                   # (TM, 3): [sin, cos, a]
    z = (tf[:, 0:1] * twt_ref[0:1, :] + tf[:, 1:2] * twt_ref[1:2, :]
         + tf[:, 2:3] * twt_ref[2:3, :] + tb_ref[...])
    te = z * jax.nn.sigmoid(z)                         # swish
    h = _matmul_t(x_ref[...], w1x_ref[...]) + _matmul_t(te, w1t_ref[...])
    h = jnp.maximum(h + b1_ref[...], 0.0)
    o_ref[...] = jnp.maximum(_matmul_t(h, w2_ref[...]) + b2_ref[...], 0.0)


def pre_mlp(x, tf, pp):
    V, Din = x.shape
    Tdim = pp["time_wt"].shape[1]
    hidden = pp["pre2_w"].shape[0]
    tm = _row_tile(V, _CAPS["row_cap"])
    return pl.pallas_call(
        _pre_mlp_kernel,
        out_shape=jax.ShapeDtypeStruct((V, hidden), jnp.float32),
        grid=(V // tm,),
        in_specs=[
            pl.BlockSpec((tm, Din), lambda i: (i, 0)),
            pl.BlockSpec((tm, 3), lambda i: (i, 0)),
            pl.BlockSpec((3, Tdim), lambda i: (0, 0)),
            pl.BlockSpec((1, Tdim), lambda i: (0, 0)),
            pl.BlockSpec((hidden, Din), lambda i: (0, 0)),
            pl.BlockSpec((hidden, Tdim), lambda i: (0, 0)),
            pl.BlockSpec((1, hidden), lambda i: (0, 0)),
            pl.BlockSpec((hidden, hidden), lambda i: (0, 0)),
            pl.BlockSpec((1, hidden), lambda i: (0, 0)),
        ],
        out_specs=pl.BlockSpec((tm, hidden), lambda i: (i, 0)),
        compiler_params=_compiler_params(("parallel",)),
    )(x, tf, pp["time_wt"], pp["time_b"], pp["pre1_wx"], pp["pre1_wt"],
      pp["pre1_b"], pp["pre2_w"], pp["pre2_b"])


def _post_mlp_kernel(x_ref, w1_ref, b1_ref, w2_ref, b2_ref, o_ref):
    h = jnp.maximum(_matmul_t(x_ref[...], w1_ref[...]) + b1_ref[...], 0.0)
    o_ref[...] = jnp.maximum(_matmul_t(h, w2_ref[...]) + b2_ref[...], 0.0)


def post_mlp(x, w1, b1, w2, b2):
    V, Din = x.shape
    mid = w1.shape[0]
    hidden = w2.shape[0]
    tm = _row_tile(V, _CAPS["row_cap"])
    return pl.pallas_call(
        _post_mlp_kernel,
        out_shape=jax.ShapeDtypeStruct((V, hidden), jnp.float32),
        grid=(V // tm,),
        in_specs=[
            pl.BlockSpec((tm, Din), lambda i: (i, 0)),
            pl.BlockSpec((mid, Din), lambda i: (0, 0)),
            pl.BlockSpec((1, mid), lambda i: (0, 0)),
            pl.BlockSpec((hidden, mid), lambda i: (0, 0)),
            pl.BlockSpec((1, hidden), lambda i: (0, 0)),
        ],
        out_specs=pl.BlockSpec((tm, hidden), lambda i: (i, 0)),
        compiler_params=_compiler_params(("parallel",)),
    )(x, w1, b1, w2, b2)


def _spectral_kernel(mat_ref, x_ref, w_ref, b_ref, o_ref):
    mat = _bf16(mat_ref[0])                       # (n, m) eigenvector basis
    xg = _bf16(x_ref[0])                          # (n, D)
    xs = lax.dot_general(mat, xg, (((0,), (0,)), ((), ())),
                         preferred_element_type=jnp.float32)      # (m, D)
    xs = _matmul_t(xs, w_ref[...]) + b_ref[...]                   # dense
    o_ref[0] = jnp.dot(mat, _bf16(xs), preferred_element_type=jnp.float32)


def spectral_conv(mats, xg, w, b):
    """mats:(B,n,m) spectral bases; xg:(B,n,D); w:(D,D) bf16; b:(1,D)."""
    B, n, m = mats.shape
    D = xg.shape[2]
    return pl.pallas_call(
        _spectral_kernel,
        out_shape=jax.ShapeDtypeStruct((B, n, D), jnp.float32),
        grid=(B,),
        in_specs=[pl.BlockSpec((1, n, m), lambda g: (g, 0, 0)),
                  pl.BlockSpec((1, n, D), lambda g: (g, 0, 0)),
                  pl.BlockSpec((D, D), lambda g: (0, 0)),
                  pl.BlockSpec((1, D), lambda g: (0, 0))],
        out_specs=pl.BlockSpec((1, n, D), lambda g: (g, 0, 0)),
        compiler_params=_compiler_params(("parallel",)),
    )(mats, xg, w, b)


def _proj_kernel(x_ref, s_ref, wrx_ref, wrs_ref, br_ref,
                 wlx_ref, wls_ref, bl_ref, xlt_ref, xr_ref):
    # One kernel reads gat_in = [x, spec] once and produces both GATv2
    # projections, each already in the layout the attention kernel wants.
    x = x_ref[...]
    s = s_ref[...]
    # target projection lin_r, node-major: (TM, H*C)
    xr_ref[...] = (_matmul_t(x, wrx_ref[...]) + _matmul_t(s, wrs_ref[...])
                   + br_ref[...])
    # source projection lin_l, channel-major (transposed): (H*C, TM)
    xlt_ref[...] = (_matmul_t(wlx_ref[...], x) + _matmul_t(wls_ref[...], s)
                    + bl_ref[...])


def project_lr(x, spec, lp):
    V, D = x.shape
    HC = lp["lin_r_wx"].shape[0]
    tm = _row_tile(V, _CAPS["row_cap"])
    return pl.pallas_call(
        _proj_kernel,
        out_shape=(jax.ShapeDtypeStruct((HC, V), jnp.float32),
                   jax.ShapeDtypeStruct((V, HC), jnp.float32)),
        grid=(V // tm,),
        in_specs=[
            pl.BlockSpec((tm, D), lambda i: (i, 0)),      # x
            pl.BlockSpec((tm, D), lambda i: (i, 0)),      # spec
            pl.BlockSpec((HC, D), lambda i: (0, 0)),      # lin_r (x part)
            pl.BlockSpec((HC, D), lambda i: (0, 0)),      # lin_r (spec part)
            pl.BlockSpec((1, HC), lambda i: (0, 0)),      # lin_r bias
            pl.BlockSpec((HC, D), lambda i: (0, 0)),      # lin_l (x part)
            pl.BlockSpec((HC, D), lambda i: (0, 0)),      # lin_l (spec part)
            pl.BlockSpec((HC, 1), lambda i: (0, 0)),      # lin_l bias (column)
        ],
        out_specs=(pl.BlockSpec((HC, tm), lambda i: (0, i)),
                   pl.BlockSpec((tm, HC), lambda i: (i, 0))),
        compiler_params=_compiler_params(("parallel",)),
    )(x, spec, lp["lin_r_wx"], lp["lin_r_ws"], lp["lin_r_b"],
      lp["lin_l_wx"], lp["lin_l_ws"], lp["lin_l_b"])


def _gat_kernel(xlt_ref, xr_ref, ea_ref, mb_ref, res_ref, we_ref, att_ref,
                b_ref, o_ref, m_ref, l_ref, acc_ref, *, H, C):
    # Flash-style GATv2 attention: per (target tile, source tile) build a
    # lane-dense (T, S) logit plane per head (channel contributions
    # accumulated, never materializing (H,T,S,C)), update online-softmax
    # m/l/acc scratch, and on the last source tile normalize + fuse
    # bias/ReLU/residual into the output write.
    j = pl.program_id(1)

    @pl.when(j == 0)
    def _():
        m_ref[...] = jnp.full_like(m_ref, -jnp.inf)
        l_ref[...] = jnp.zeros_like(l_ref)
        acc_ref[...] = jnp.zeros_like(acc_ref)

    ea = ea_ref[...].astype(jnp.float32)         # (T, S) edge attrs (bf16 in)
    mb = mb_ref[...].astype(jnp.float32)         # (T, S) additive mask bias
    xlt = xlt_ref[...]                           # (HC, S) source projections
    xr = xr_ref[...]                             # (T, HC) target projections

    for h in range(H):
        logits = mb                              # additive mask, once per head
        for c in range(C):
            hc = h * C + c
            pre = (xr[:, hc:hc + 1]              # target term  (T, 1)
                   + xlt[hc:hc + 1, :]           # source term  (1, S)
                   + ea * we_ref[0, hc])         # edge term (SMEM scalar)
            pre = jnp.maximum(pre, 0.2 * pre)    # leaky_relu(0.2): mul+max
            logits = logits + att_ref[0, hc] * pre
        m_old = m_ref[h]                                          # (T, 1)
        m_new = jnp.maximum(m_old, jnp.max(logits, axis=-1, keepdims=True))
        scale = jnp.exp(m_old - m_new)
        p = jnp.exp(logits - m_new)              # masked entries -> ~0
        l_ref[h] = scale * l_ref[h] + jnp.sum(p, axis=-1, keepdims=True)
        xl_h = xlt[h * C:(h + 1) * C, :]                          # (C, S)
        acc_ref[h] = scale * acc_ref[h] + lax.dot_general(
            _bf16(p), _bf16(xl_h), (((1,), (1,)), ((), ())),
            preferred_element_type=jnp.float32)                   # (T, C)
        m_ref[h] = m_new

    @pl.when(j == pl.num_programs(1) - 1)
    def _():
        res = res_ref[...]
        bias = b_ref[...]
        for h in range(H):
            sl = slice(h * C, (h + 1) * C)
            gat_h = acc_ref[h] * (1.0 / l_ref[h]) + bias[:, sl]
            o_ref[:, sl] = res[:, sl] + jnp.maximum(gat_h, 0.0)   # +res, relu


def gat_attention(xl_t, xr, ea_bf, maskb, res, we, att, bias, H, C):
    HC = H * C
    V = xr.shape[0]
    tt = _row_tile(V, _CAPS["gat_t_cap"])     # target tile
    ts = _row_tile(V, _CAPS["gat_s_cap"])     # source tile (reduction axis)
    return pl.pallas_call(
        functools.partial(_gat_kernel, H=H, C=C),
        out_shape=jax.ShapeDtypeStruct((V, HC), jnp.float32),
        grid=(V // tt, V // ts),
        in_specs=[
            pl.BlockSpec((HC, ts), lambda i, j: (0, j)),    # xl_t (source tile)
            pl.BlockSpec((tt, HC), lambda i, j: (i, 0)),    # xr (target tile)
            pl.BlockSpec((tt, ts), lambda i, j: (i, j)),    # edge attrs (bf16)
            pl.BlockSpec((tt, ts), lambda i, j: (i, j)),    # mask bias (bf16)
            pl.BlockSpec((tt, HC), lambda i, j: (i, 0)),    # residual x
            pl.BlockSpec(memory_space=_SMEM),               # lin_edge weight
            pl.BlockSpec(memory_space=_SMEM),               # att vector
            pl.BlockSpec((1, HC), lambda i, j: (0, 0)),     # gat bias
        ],
        out_specs=pl.BlockSpec((tt, HC), lambda i, j: (i, 0)),
        scratch_shapes=[
            pltpu.VMEM((H, tt, 1), jnp.float32),            # running max
            pltpu.VMEM((H, tt, 1), jnp.float32),            # running denom
            pltpu.VMEM((H, tt, C), jnp.float32),            # running value acc
        ],
        compiler_params=_compiler_params(("parallel", "arbitrary"),
                                         vmem_limit_bytes=_CAPS["vmem"]),
    )(xl_t, xr, ea_bf, maskb, res, we, att, bias)


def _ln_dense_res_kernel(stat_ref, z_ref, nw_ref, nb_ref, w_ref, b_ref, o_ref):
    # x = graph-LN(z) using precomputed global (mean, inv) SMEM scalars,
    # then  o = x + dense(x)  (residual).
    x = (z_ref[...] - stat_ref[0, 0]) * stat_ref[0, 1] * nw_ref[...] + nb_ref[...]
    o_ref[...] = x + _matmul_t(x, w_ref[...]) + b_ref[...]


def ln_dense_res(z, stat, nw, nb, w, b):
    V, Din = z.shape
    Dout = w.shape[0]
    tm = _row_tile(V, _CAPS["row_cap"])
    return pl.pallas_call(
        _ln_dense_res_kernel,
        out_shape=jax.ShapeDtypeStruct((V, Dout), jnp.float32),
        grid=(V // tm,),
        in_specs=[
            pl.BlockSpec(memory_space=_SMEM),               # (1,2) [mean, inv]
            pl.BlockSpec((tm, Din), lambda i: (i, 0)),
            pl.BlockSpec((1, Din), lambda i: (0, 0)),
            pl.BlockSpec((1, Din), lambda i: (0, 0)),
            pl.BlockSpec((Dout, Din), lambda i: (0, 0)),
            pl.BlockSpec((1, Dout), lambda i: (0, 0)),
        ],
        out_specs=pl.BlockSpec((tm, Dout), lambda i: (i, 0)),
        compiler_params=_compiler_params(("parallel",)),
    )(stat, z, nw, nb, w, b)


def _ln_kernel(stat_ref, z_ref, nw_ref, nb_ref, o_ref):
    o_ref[...] = ((z_ref[...] - stat_ref[0, 0]) * stat_ref[0, 1] * nw_ref[...]
                  + nb_ref[...])


def ln_apply(z, stat, nw, nb):
    V, D = z.shape
    tm = _row_tile(V, _CAPS["row_cap"])
    return pl.pallas_call(
        _ln_kernel,
        out_shape=jax.ShapeDtypeStruct((V, D), jnp.float32),
        grid=(V // tm,),
        in_specs=[
            pl.BlockSpec(memory_space=_SMEM),
            pl.BlockSpec((tm, D), lambda i: (i, 0)),
            pl.BlockSpec((1, D), lambda i: (0, 0)),
            pl.BlockSpec((1, D), lambda i: (0, 0)),
        ],
        out_specs=pl.BlockSpec((tm, D), lambda i: (i, 0)),
        compiler_params=_compiler_params(("parallel",)),
    )(stat, z, nw, nb)


def post_block(z1, lp, eps=1e-5):
    # norm1 -> dense2 -> +res -> norm2 -> dense3 -> +res -> norm3, row-tiled.
    # Graph-mode LayerNorm needs global statistics; those are cheap plain-JAX
    # reductions (glue) feeding SMEM scalars, so the heavy per-row work stays
    # pipelined and uses both TensorCores.
    s1 = _graph_ln_stats(z1, eps)
    z2 = ln_dense_res(z1, s1, lp["norm1_w"], lp["norm1_b"],
                      lp["dense2_w"], lp["dense2_b"])
    s2 = _graph_ln_stats(z2, eps)
    z3 = ln_dense_res(z2, s2, lp["norm2_w"], lp["norm2_b"],
                      lp["dense3_w"], lp["dense3_b"])
    s3 = _graph_ln_stats(z3, eps)
    return ln_apply(z3, s3, lp["norm3_w"], lp["norm3_b"])


def _link_kernel(e1_ref, e2_ref, w_ref, b_ref, o_ref):
    # sigmoid(sum_c e1*e2*w + b): VPU multiply-reduce, lane-dense (1, te) store.
    z = e1_ref[...] * e2_ref[...] * w_ref[...]              # (Hd, te)
    s = jnp.sum(z, axis=0, keepdims=True) + b_ref[0, 0]     # (1, te)
    o_ref[...] = jax.nn.sigmoid(s)


def link_predict(e1t, e2t, w_col, b):
    Hd, Ep = e1t.shape
    te = _row_tile(Ep, cap=8192)              # edge (lane) tile
    return pl.pallas_call(
        _link_kernel,
        out_shape=jax.ShapeDtypeStruct((1, Ep), jnp.float32),
        grid=(Ep // te,),
        in_specs=[pl.BlockSpec((Hd, te), lambda i: (0, i)),
                  pl.BlockSpec((Hd, te), lambda i: (0, i)),
                  pl.BlockSpec((Hd, 1), lambda i: (0, 0)),
                  pl.BlockSpec(memory_space=_SMEM)],
        out_specs=pl.BlockSpec((1, te), lambda i: (0, i)),
        compiler_params=_compiler_params(("parallel",)),
    )(e1t, e2t, w_col, b)


# ------------------------------ parameters --------------------------------- #

def init_params(key, cfg):
    keys = iter(jax.random.split(key, 256))

    def lin(out_d, in_d):
        k1, k2 = next(keys), next(keys)
        scale = 1.0 / np.sqrt(in_d)
        return (scale * jax.random.normal(k1, (out_d, in_d), jnp.float32),
                scale * jax.random.normal(k2, (out_d,), jnp.float32))

    H, C = cfg["gat_num_heads"], cfg["gat_hidden_dim"]
    p = {}
    p["time_w"], p["time_b"] = lin(cfg["time_embed_size"], 3)
    p["pre1_w"], p["pre1_b"] = lin(cfg["hidden_dim"],
                                   cfg["input_dim"] + cfg["time_embed_size"])
    p["pre2_w"], p["pre2_b"] = lin(cfg["hidden_dim"], cfg["hidden_dim"])
    layers = []
    for i in range(cfg["num_gnn_layers"]):
        D = cfg["hidden_dim"] if i == 0 else H * C
        lp = {}
        lp["spec_w"], lp["spec_b"] = lin(D, D)                 # spectral_dense
        lp["lin_l_w"], lp["lin_l_b"] = lin(H * C, 2 * D)       # GATv2 lin_l
        lp["lin_r_w"], lp["lin_r_b"] = lin(H * C, 2 * D)       # GATv2 lin_r
        lp["lin_edge_w"], _ = lin(H * C, 1)                    # lin_edge (no bias)
        lp["att"] = (1.0 / np.sqrt(C)) * jax.random.normal(next(keys), (H, C),
                                                           jnp.float32)
        lp["gat_bias"] = jnp.zeros((H * C,), jnp.float32)
        lp["norm1_w"] = jnp.ones((H * C,), jnp.float32)
        lp["norm1_b"] = jnp.zeros((H * C,), jnp.float32)
        lp["dense2_w"], lp["dense2_b"] = lin(D, H * C)
        lp["norm2_w"] = jnp.ones((D,), jnp.float32)
        lp["norm2_b"] = jnp.zeros((D,), jnp.float32)
        lp["dense3_w"], lp["dense3_b"] = lin(D, D)
        lp["norm3_w"] = jnp.ones((D,), jnp.float32)
        lp["norm3_b"] = jnp.zeros((D,), jnp.float32)
        layers.append(lp)
    p["layers"] = layers
    p["post1_w"], p["post1_b"] = lin(cfg["hidden_dim"], H * C)
    p["post2_w"], p["post2_b"] = lin(cfg["hidden_dim"], cfg["hidden_dim"])
    p["link_w"], p["link_b"] = lin(1, cfg["hidden_dim"])
    return p


def prep_params(p, cfg):
    """One-time re-layout of the torch-style parameters for the kernels.
    Matmul weights are pre-cast to bf16 here (once), biases/norms stay f32."""
    H, C = cfg["gat_num_heads"], cfg["gat_hidden_dim"]
    HC = H * C
    in_dim = cfg["input_dim"]
    pp = {
        "time_wt": p["time_w"].T,                          # (3, Tdim) f32 (VPU)
        "time_b": p["time_b"].reshape(1, -1),
        "pre1_wx": _bf16(p["pre1_w"][:, :in_dim]),
        "pre1_wt": _bf16(p["pre1_w"][:, in_dim:]),
        "pre1_b": p["pre1_b"].reshape(1, -1),
        "pre2_w": _bf16(p["pre2_w"]),
        "pre2_b": p["pre2_b"].reshape(1, -1),
        "post1_w": _bf16(p["post1_w"]),
        "post1_b": p["post1_b"].reshape(1, -1),
        "post2_w": _bf16(p["post2_w"]),
        "post2_b": p["post2_b"].reshape(1, -1),
        "link_w": p["link_w"].reshape(-1, 1),              # (hidden, 1) column
        "link_b": p["link_b"].reshape(1, 1),
    }
    layers = []
    for lp in p["layers"]:
        D = lp["spec_w"].shape[0]
        layers.append({
            "spec_w": _bf16(lp["spec_w"]),
            "spec_b": lp["spec_b"].reshape(1, -1),
            "lin_r_wx": _bf16(lp["lin_r_w"][:, :D]),
            "lin_r_ws": _bf16(lp["lin_r_w"][:, D:]),
            "lin_r_b": lp["lin_r_b"].reshape(1, -1),
            "lin_l_wx": _bf16(lp["lin_l_w"][:, :D]),
            "lin_l_ws": _bf16(lp["lin_l_w"][:, D:]),
            "lin_l_b": lp["lin_l_b"].reshape(-1, 1),       # column for (HC, TM)
            "we": lp["lin_edge_w"].reshape(1, HC),         # SMEM scalars
            "att": lp["att"].reshape(1, HC),               # SMEM scalars
            "gat_bias": lp["gat_bias"].reshape(1, HC),
            "norm1_w": lp["norm1_w"].reshape(1, -1),
            "norm1_b": lp["norm1_b"].reshape(1, -1),
            "dense2_w": _bf16(lp["dense2_w"]),
            "dense2_b": lp["dense2_b"].reshape(1, -1),
            "norm2_w": lp["norm2_w"].reshape(1, -1),
            "norm2_b": lp["norm2_b"].reshape(1, -1),
            "dense3_w": _bf16(lp["dense3_w"]),
            "dense3_b": lp["dense3_b"].reshape(1, -1),
            "norm3_w": lp["norm3_w"].reshape(1, -1),
            "norm3_b": lp["norm3_b"].reshape(1, -1),
        })
    pp["layers"] = layers
    return pp


# ------------------------------ forward pass ------------------------------- #

def gat_layer_forward(lp, x, ea_bf, maskb, mats, B, n, H, C):
    V, D = x.shape
    HC = H * C
    assert D == HC, "residual requires input_dim == heads * att_hidden_dim"
    # spectral convolution: mat^T @ x -> Linear -> mat @ (.)
    spec = spectral_conv(mats, x.reshape(B, n, D),
                         lp["spec_w"], lp["spec_b"]).reshape(V, D)
    # fused lin_l / lin_r projections of gat_in = [x, spec]
    xl_t, xr = project_lr(x, spec, lp)
    # GATv2 attention (flash-style over sources; +bias, +ReLU, +residual fused)
    z1 = gat_attention(xl_t, xr, ea_bf, maskb, x,
                       lp["we"], lp["att"], lp["gat_bias"], H, C)
    # norm1 -> dense2 -> +res -> norm2 -> dense3 -> +res -> norm3 (row-tiled)
    return post_block(z1, lp)


def graph_link_gat_forward(pp, cfg, x, t, edge_index, B, n, full_src, full_dst):
    V = x.shape[0]
    H, C = cfg["gat_num_heads"], cfg["gat_hidden_dim"]

    # --- pre-GNN MLP (time embedding + 2 dense layers, fused, row-tiled) ---
    a = (t / cfg["t_limit"]).reshape(V, 1).astype(jnp.float32)
    tf = jnp.concatenate([jnp.sin(a * (np.pi / 2)), jnp.cos(a * (np.pi / 2)), a],
                         axis=1)
    node_embed = pre_mlp(x.astype(jnp.float32), tf, pp)

    # --- edge indicators / dense GAT attention planes (plain-JAX glue) ---
    adj_g = jnp.zeros((V, V), jnp.float32).at[edge_index[0], edge_index[1]].set(1.0)
    edge_ind = adj_g[full_src, full_dst]          # E-vector: 1 iff edge exists
    # self-loop edge attr = per-target mean of incoming edge attrs ('mean' fill)
    cnt = jnp.zeros((V,), jnp.float32).at[full_dst].add(1.0)
    summ = jnp.zeros((V,), jnp.float32).at[full_dst].add(edge_ind)
    loop_attr = jnp.where(cnt > 0, summ / jnp.maximum(cnt, 1.0), 0.0)
    ea = jnp.zeros((V, V), jnp.float32).at[full_dst, full_src].set(edge_ind)
    ea = ea + jnp.diag(loop_attr)
    mask = (jnp.zeros((V, V), jnp.float32).at[full_dst, full_src].set(1.0)
            + jnp.eye(V, dtype=jnp.float32))
    mask = jnp.clip(mask, 0.0, 1.0)
    # bf16 streams for the attention kernel: edge attrs + ADDITIVE mask bias.
    ea_bf = ea.astype(jnp.bfloat16)
    maskb = ((mask - 1.0) * 1e30).astype(jnp.bfloat16)   # 0 allowed, -1e30 not

    # --- normalized Laplacian + spectral basis (eigh stays in plain JAX) ---
    adj = jnp.stack([adj_g[g * n:(g + 1) * n, g * n:(g + 1) * n] for g in range(B)])
    deg = jnp.sum(adj, axis=2)
    sqrt_deg = 1.0 / jnp.sqrt(deg + cfg["epsilon"])
    lap = (jnp.eye(n, dtype=jnp.float32)[None]
           - sqrt_deg[:, :, None] * adj * sqrt_deg[:, None, :])
    _, evecs = jnp.linalg.eigh(lap)
    m = min(cfg["spectrum_dim"], n)
    mats = evecs[:, :, :m]                                            # (B, n, m)

    # --- GNN layers ---
    for lp in pp["layers"]:
        node_embed = gat_layer_forward(lp, node_embed, ea_bf, maskb, mats,
                                       B, n, H, C)

    # --- post-GNN MLP (fused, row-tiled) ---
    node_embed = post_mlp(node_embed, pp["post1_w"], pp["post1_b"],
                          pp["post2_w"], pp["post2_b"])

    # --- link head: lane-dense VPU multiply-reduce, tiled over edges ---
    E = full_src.shape[0]
    Ep = ((E + 127) // 128) * 128
    if Ep != E:
        padi = jnp.zeros((Ep - E,), full_src.dtype)
        src_p = jnp.concatenate([full_src, padi])
        dst_p = jnp.concatenate([full_dst, padi])
    else:
        src_p, dst_p = full_src, full_dst
    # TODO(synk): the src/dst gathers stay in XLA glue; a scalar-prefetched
    #             in-kernel gather would remove the two (hidden, E) temporaries.
    e1t = jnp.take(node_embed, src_p, axis=0).T      # (hidden, Ep)
    e2t = jnp.take(node_embed, dst_p, axis=0).T
    probs = link_predict(e1t, e2t, pp["link_w"], pp["link_b"])
    return probs[0, :E]


# ---------------------------------- main ------------------------------------ #

if __name__ == "__main__":
    cfg = dict(input_dim=8, t_limit=10.0, num_gnn_layers=2, gat_num_heads=4,
               gat_hidden_dim=8, hidden_dim=32, time_embed_size=16,
               spectrum_dim=3, epsilon=1e-6)
    B, n = 2, 8          # 2 graphs, 8 nodes each
    V = B * n

    key = jax.random.PRNGKey(0)
    k_x, k_adj, k_param = jax.random.split(key, 3)

    x = jax.random.normal(k_x, (V, cfg["input_dim"]), jnp.float32)

    # random symmetric per-graph adjacency -> PyG-style edge_index (both directions)
    up = jnp.triu(jax.random.bernoulli(k_adj, 0.4, (B, n, n)).astype(jnp.int32), k=1)
    adj_np = np.array(up + jnp.transpose(up, (0, 2, 1)))
    src_l, dst_l = [], []
    for g in range(B):
        r, c = np.nonzero(adj_np[g])
        src_l.append(r + g * n)
        dst_l.append(c + g * n)
    edge_index = jnp.array(np.stack([np.concatenate(src_l), np.concatenate(dst_l)]),
                           dtype=jnp.int32)

    # canonical full edge list: all possible pairs (u < v) within each graph
    fs, fd = [], []
    for g in range(B):
        for u in range(n):
            for v in range(u + 1, n):
                fs.append(g * n + u)
                fd.append(g * n + v)
    full_src = jnp.array(fs, jnp.int32)
    full_dst = jnp.array(fd, jnp.int32)

    # per-graph time (same time for all nodes of a graph)
    t = jnp.repeat(jnp.array([3.0, 7.0], jnp.float32), n)

    params = init_params(k_param, cfg)
    pp = prep_params(params, cfg)
    out = graph_link_gat_forward(pp, cfg, x, t, edge_index, B, n, full_src, full_dst)
    out = jax.block_until_ready(out)
    assert out.shape == (full_src.shape[0],)
    assert bool(jnp.all(jnp.isfinite(out)))
    print("KERNEL_OK")
</pallas_src>

<mosaic_0001>
module attributes {stable_mosaic.version = 11 : i64} {
  func.func @_pre_mlp_kernel(%arg0: i32, %arg1: memref<16x8xf32, #tpu.memory_space<vmem>>, %arg2: memref<16x3xf32, #tpu.memory_space<vmem>>, %arg3: memref<3x16xf32, #tpu.memory_space<vmem>>, %arg4: memref<1x16xf32, #tpu.memory_space<vmem>>, %arg5: memref<32x8xbf16, #tpu.memory_space<vmem>>, %arg6: memref<32x16xbf16, #tpu.memory_space<vmem>>, %arg7: memref<1x32xf32, #tpu.memory_space<vmem>>, %arg8: memref<32x32xbf16, #tpu.memory_space<vmem>>, %arg9: memref<1x32xf32, #tpu.memory_space<vmem>>, %arg10: memref<16x32xf32, #tpu.memory_space<vmem>>) attributes {dimension_semantics = [#tpu.dimension_semantics<parallel>], iteration_bounds = array<i64: 1>, scalar_prefetch = 0 : i64, scratch_operands = 0 : i64, tpu.core_type = #tpu.core_type<tc>, window_params = [{transform_indices = @transform_0, window_bounds = array<i64: 16, 8>}, {transform_indices = @transform_1, window_bounds = array<i64: 16, 3>}, {pipeline_mode = #tpu.pipeline_mode<synchronous>, transform_indices = @transform_2, window_bounds = array<i64: 3, 16>}, {pipeline_mode = #tpu.pipeline_mode<synchronous>, transform_indices = @transform_3, window_bounds = array<i64: 1, 16>}, {pipeline_mode = #tpu.pipeline_mode<synchronous>, transform_indices = @transform_4, window_bounds = array<i64: 32, 8>}, {pipeline_mode = #tpu.pipeline_mode<synchronous>, transform_indices = @transform_5, window_bounds = array<i64: 32, 16>}, {pipeline_mode = #tpu.pipeline_mode<synchronous>, transform_indices = @transform_6, window_bounds = array<i64: 1, 32>}, {pipeline_mode = #tpu.pipeline_mode<synchronous>, transform_indices = @transform_7, window_bounds = array<i64: 32, 32>}, {pipeline_mode = #tpu.pipeline_mode<synchronous>, transform_indices = @transform_8, window_bounds = array<i64: 1, 32>}, {transform_indices = @transform_9, window_bounds = array<i64: 16, 32>}]} {
    %c0 = arith.constant 0 : index
    %c0_0 = arith.constant 0 : index
    %0 = vector.load %arg2[%c0, %c0_0] : memref<16x3xf32, #tpu.memory_space<vmem>>, vector<16x3xf32>
    %1 = vector.extract_strided_slice %0 {offsets = [0, 0], sizes = [16, 1], strides = [1, 1]} : vector<16x3xf32> to vector<16x1xf32>
    %c0_1 = arith.constant 0 : index
    %c0_2 = arith.constant 0 : index
    %2 = vector.load %arg3[%c0_1, %c0_2] : memref<3x16xf32, #tpu.memory_space<vmem>>, vector<1x16xf32>
    %3 = vector.broadcast %1 : vector<16x1xf32> to vector<16x16xf32>
    %4 = vector.broadcast %2 : vector<1x16xf32> to vector<16x16xf32>
    %5 = arith.mulf %3, %4 : vector<16x16xf32>
    %6 = vector.extract_strided_slice %0 {offsets = [0, 1], sizes = [16, 1], strides = [1, 1]} : vector<16x3xf32> to vector<16x1xf32>
    %c1 = arith.constant 1 : index
    %c0_3 = arith.constant 0 : index
    %7 = vector.load %arg3[%c1, %c0_3] : memref<3x16xf32, #tpu.memory_space<vmem>>, vector<1x16xf32>
    %8 = vector.broadcast %6 : vector<16x1xf32> to vector<16x16xf32>
    %9 = vector.broadcast %7 : vector<1x16xf32> to vector<16x16xf32>
    %10 = arith.mulf %8, %9 : vector<16x16xf32>
    %11 = arith.addf %5, %10 : vector<16x16xf32>
    %12 = vector.extract_strided_slice %0 {offsets = [0, 2], sizes = [16, 1], strides = [1, 1]} : vector<16x3xf32> to vector<16x1xf32>
    %c2 = arith.constant 2 : index
    %c0_4 = arith.constant 0 : index
    %13 = vector.load %arg3[%c2, %c0_4] : memref<3x16xf32, #tpu.memory_space<vmem>>, vector<1x16xf32>
    %14 = vector.broadcast %12 : vector<16x1xf32> to vector<16x16xf32>
    %15 = vector.broadcast %13 : vector<1x16xf32> to vector<16x16xf32>
    %16 = arith.mulf %14, %15 : vector<16x16xf32>
    %17 = arith.addf %11, %16 : vector<16x16xf32>
    %c0_5 = arith.constant 0 : index
    %c0_6 = arith.constant 0 : index
    %18 = vector.load %arg4[%c0_5, %c0_6] : memref<1x16xf32, #tpu.memory_space<vmem>>, vector<1x16xf32>
    %19 = vector.broadcast %18 : vector<1x16xf32> to vector<16x16xf32>
    %20 = arith.addf %17, %19 : vector<16x16xf32>
    %21 = arith.negf %20 : vector<16x16xf32>
    %22 = math.exp %21 : vector<16x16xf32>
    %cst = arith.constant 1.000000e+00 : f32
    %23 = vector.broadcast %cst : f32 to vector<16x16xf32>
    %24 = arith.addf %23, %22 : vector<16x16xf32>
    %25 = arith.divf %23, %24 : vector<16x16xf32>
    %26 = arith.mulf %20, %25 : vector<16x16xf32>
    %c0_7 = arith.constant 0 : index
    %c0_8 = arith.constant 0 : index
    %27 = vector.load %arg1[%c0_7, %c0_8] : memref<16x8xf32, #tpu.memory_space<vmem>>, vector<16x8xf32>
    %c0_9 = arith.constant 0 : index
    %c0_10 = arith.constant 0 : index
    %28 = vector.load %arg5[%c0_9, %c0_10] : memref<32x8xbf16, #tpu.memory_space<vmem>>, vector<32x8xbf16>
    %29 = arith.truncf %27 : vector<16x8xf32> to vector<16x8xbf16>
    %cst_11 = arith.constant dense<0.000000e+00> : vector<16x32xf32>
    %30 = tpu.matmul %29, %28, %cst_11 {dimension_numbers = #tpu.dot_dimension_numbers<[1], [1], [0], [0], [0, 0, 1, 0], [], []>} : vector<16x8xbf16>, vector<32x8xbf16>, vector<16x32xf32> -> vector<16x32xf32>
    %c0_12 = arith.constant 0 : index
    %c0_13 = arith.constant 0 : index
    %31 = vector.load %arg6[%c0_12, %c0_13] : memref<32x16xbf16, #tpu.memory_space<vmem>>, vector<32x16xbf16>
    %32 = arith.truncf %26 : vector<16x16xf32> to vector<16x16xbf16>
    %cst_14 = arith.constant dense<0.000000e+00> : vector<16x32xf32>
    %33 = tpu.matmul %32, %31, %cst_14 {dimension_numbers = #tpu.dot_dimension_numbers<[1], [1], [0], [0], [0, 0, 1, 0], [], []>} : vector<16x16xbf16>, vector<32x16xbf16>, vector<16x32xf32> -> vector<16x32xf32>
    %34 = arith.addf %30, %33 : vector<16x32xf32>
    %c0_15 = arith.constant 0 : index
    %c0_16 = arith.constant 0 : index
    %35 = vector.load %arg7[%c0_15, %c0_16] : memref<1x32xf32, #tpu.memory_space<vmem>>, vector<1x32xf32>
    %36 = vector.broadcast %35 : vector<1x32xf32> to vector<16x32xf32>
    %37 = arith.addf %34, %36 : vector<16x32xf32>
    %cst_17 = arith.constant 0.000000e+00 : f32
    %38 = vector.broadcast %cst_17 : f32 to vector<16x32xf32>
    %39 = arith.maximumf %37, %38 : vector<16x32xf32>
    %c0_18 = arith.constant 0 : index
    %c0_19 = arith.constant 0 : index
    %40 = vector.load %arg8[%c0_18, %c0_19] : memref<32x32xbf16, #tpu.memory_space<vmem>>, vector<32x32xbf16>
    %41 = arith.truncf %39 : vector<16x32xf32> to vector<16x32xbf16>
    %cst_20 = arith.constant dense<0.000000e+00> : vector<16x32xf32>
    %42 = tpu.matmul %41, %40, %cst_20 {dimension_numbers = #tpu.dot_dimension_numbers<[1], [1], [0], [0], [0, 0, 1, 0], [], []>} : vector<16x32xbf16>, vector<32x32xbf16>, vector<16x32xf32> -> vector<16x32xf32>
    %c0_21 = arith.constant 0 : index
    %c0_22 = arith.constant 0 : index
    %43 = vector.load %arg9[%c0_21, %c0_22] : memref<1x32xf32, #tpu.memory_space<vmem>>, vector<1x32xf32>
    %44 = vector.broadcast %43 : vector<1x32xf32> to vector<16x32xf32>
    %45 = arith.addf %42, %44 : vector<16x32xf32>
    %cst_23 = arith.constant 0.000000e+00 : f32
    %46 = vector.broadcast %cst_23 : f32 to vector<16x32xf32>
    %47 = arith.maximumf %45, %46 : vector<16x32xf32>
    %c0_24 = arith.constant 0 : index
    %c0_25 = arith.constant 0 : index
    %48 = vector.load %arg10[%c0_24, %c0_25] : memref<16x32xf32, #tpu.memory_space<vmem>>, vector<16x32xf32>
    tpu.vector_store %arg10[%c0_24, %c0_25], %47 {strides = array<i32>} : memref<16x32xf32, #tpu.memory_space<vmem>>, vector<16x32xf32>,
    return
  }
  func.func @transform_0(%arg0: i32) -> (i32, i32) {
    %c0_i32 = arith.constant 0 : i32
    %c0_i32_0 = arith.constant 0 : i32
    return %arg0, %c0_i32 : i32, i32
  }
  func.func @transform_1(%arg0: i32) -> (i32, i32) {
    %c0_i32 = arith.constant 0 : i32
    %c0_i32_0 = arith.constant 0 : i32
    return %arg0, %c0_i32 : i32, i32
  }
  func.func @transform_2(%arg0: i32) -> (i32, i32) {
    %c0_i32 = arith.constant 0 : i32
    %c0_i32_0 = arith.constant 0 : i32
    %c0_i32_1 = arith.constant 0 : i32
    return %c0_i32, %c0_i32_0 : i32, i32
  }
  func.func @transform_3(%arg0: i32) -> (i32, i32) {
    %c0_i32 = arith.constant 0 : i32
    %c0_i32_0 = arith.constant 0 : i32
    %c0_i32_1 = arith.constant 0 : i32
    return %c0_i32, %c0_i32_0 : i32, i32
  }
  func.func @transform_4(%arg0: i32) -> (i32, i32) {
    %c0_i32 = arith.constant 0 : i32
    %c0_i32_0 = arith.constant 0 : i32
    %c0_i32_1 = arith.constant 0 : i32
    return %c0_i32, %c0_i32_0 : i32, i32
  }
  func.func @transform_5(%arg0: i32) -> (i32, i32) {
    %c0_i32 = arith.constant 0 : i32
    %c0_i32_0 = arith.constant 0 : i32
    %c0_i32_1 = arith.constant 0 : i32
    return %c0_i32, %c0_i32_0 : i32, i32
  }
  func.func @transform_6(%arg0: i32) -> (i32, i32) {
    %c0_i32 = arith.constant 0 : i32
    %c0_i32_0 = arith.constant 0 : i32
    %c0_i32_1 = arith.constant 0 : i32
    return %c0_i32, %c0_i32_0 : i32, i32
  }
  func.func @transform_7(%arg0: i32) -> (i32, i32) {
    %c0_i32 = arith.constant 0 : i32
    %c0_i32_0 = arith.constant 0 : i32
    %c0_i32_1 = arith.constant 0 : i32
    return %c0_i32, %c0_i32_0 : i32, i32
  }
  func.func @transform_8(%arg0: i32) -> (i32, i32) {
    %c0_i32 = arith.constant 0 : i32
    %c0_i32_0 = arith.constant 0 : i32
    %c0_i32_1 = arith.constant 0 : i32
    return %c0_i32, %c0_i32_0 : i32, i32
  }
  func.func @transform_9(%arg0: i32) -> (i32, i32) {
    %c0_i32 = arith.constant 0 : i32
    %c0_i32_0 = arith.constant 0 : i32
    return %arg0, %c0_i32 : i32, i32
  }
}

</mosaic_0001>

<llo_original>
// kernel: tpu_custom_call.1
$region0: #{tpu_custom_call.1}
  #allocation0 [shape = 'u32[]', space=smem, size = 0x4, offset = 0x4, fixed_abs, tag = 'smem constant byte address 0x4 - core index']
  #allocation1 [shape = 'u32[72,128]{1,0:T(1,128)}', space=vmem, size = 0x9000, scoped, tag = 'internal scratch']
  %s0 = inlined_call_operand.vmem [shape: f32[16,8], index: 0, kind: input, shape index: {}]
  %s1 = inlined_call_operand.vmem [shape: f32[16,3], index: 1, kind: input, shape index: {}]
  %s2 = inlined_call_operand.vmem [shape: f32[3,16], index: 2, kind: input, shape index: {}]
  %s3 = inlined_call_operand.vmem [shape: f32[1,16], index: 3, kind: input, shape index: {}]
  %s4 = inlined_call_operand.vmem [shape: bf16[32,8], index: 4, kind: input, shape index: {}]
  %s5 = inlined_call_operand.vmem [shape: bf16[32,16], index: 5, kind: input, shape index: {}]
  %s6 = inlined_call_operand.vmem [shape: f32[1,32], index: 6, kind: input, shape index: {}]
  %s7 = inlined_call_operand.vmem [shape: bf16[32,32], index: 7, kind: input, shape index: {}]
  %s8 = inlined_call_operand.vmem [shape: f32[1,32], index: 8, kind: input, shape index: {}]
  %s9 = inlined_call_operand.hbm [shape: f32[16,32], index: 9, kind: output, shape index: {}]
  %s10 = sld [smem:[#allocation0]]
  $region46: #{tpu_custom_call.1} parent=0
    _
  %s12 = ssub.s32 1, %s10
  %s13 = scalar_select 0, %s12, %s10
  $region1: #{tpu_custom_call.1} parent=0
    #allocation2 [shape = 'u8[8192]{0}', space=vmem, size = 0x2000, scoped, tag = 'output window, operand 0, single buffered']
    #allocation3 [shape = 's32[1]{0}', space=sflag, size = 0x4, scoped, tag = 'scoped memory for tpu_custom_call.1']
    %14 = vsyncpa [#allocation3], 0
    // Predicated region
    $region2: #{tpu_custom_call.1} parent=1 // pred_check
      _
    $region3: #{tpu_custom_call.1} parent=1 // pred_check_branch
      %16 = sbr.rel (0) target = $region5
    $region4: #{tpu_custom_call.1} parent=1 // pred_region
      _
    $region5: #{tpu_custom_call.1} parent=1 // pred_fallthru
      _
    // Predicated region
    $region6: #{tpu_custom_call.1} parent=1 // pred_check
      _
    $region7: #{tpu_custom_call.1} parent=1 // pred_check_branch
      %18 = sbr.rel (0) target = $region9
    $region8: #{tpu_custom_call.1} parent=1 // pred_region
      _
    $region9: #{tpu_custom_call.1} parent=1 // pred_fallthru
      _
    // Predicated region
    $region10: #{tpu_custom_call.1} parent=1 // pred_check
      _
    $region11: #{tpu_custom_call.1} parent=1 // pred_check_branch
      %20 = sbr.rel (0) target = $region13
    $region12: #{tpu_custom_call.1} parent=1 // pred_region
      _
    $region13: #{tpu_custom_call.1} parent=1 // pred_fallthru
      _
    // Predicated region
    $region14: #{tpu_custom_call.1} parent=1 // pred_check
      _
    $region15: #{tpu_custom_call.1} parent=1 // pred_check_branch
      %22 = sbr.rel (0) target = $region17
    $region16: #{tpu_custom_call.1} parent=1 // pred_region
      _
    $region17: #{tpu_custom_call.1} parent=1 // pred_fallthru
      _
    // Predicated region
    $region18: #{tpu_custom_call.1} parent=1 // pred_check
      _
    $region19: #{tpu_custom_call.1} parent=1 // pred_check_branch
      %24 = sbr.rel (0) target = $region21
    $region20: #{tpu_custom_call.1} parent=1 // pred_region
      _
    $region21: #{tpu_custom_call.1} parent=1 // pred_fallthru
      _
    // Predicated region
    $region22: #{tpu_custom_call.1} parent=1 // pred_check
      _
    $region23: #{tpu_custom_call.1} parent=1 // pred_check_branch
      %26 = sbr.rel (0) target = $region25
    $region24: #{tpu_custom_call.1} parent=1 // pred_region
      _
    $region25: #{tpu_custom_call.1} parent=1 // pred_fallthru
      _
    // Predicated region
    $region26: #{tpu_custom_call.1} parent=1 // pred_check
      _
    $region27: #{tpu_custom_call.1} parent=1 // pred_check_branch
      %28 = sbr.rel (0) target = $region29
    $region28: #{tpu_custom_call.1} parent=1 // pred_region
      _
    $region29: #{tpu_custom_call.1} parent=1 // pred_fallthru
      _
    // Predicated region
    $region30: #{tpu_custom_call.1} parent=1 // pred_check
      _
    $region31: #{tpu_custom_call.1} parent=1 // pred_check_branch
      %30 = sbr.rel (0) target = $region33
    $region32: #{tpu_custom_call.1} parent=1 // pred_region
      _
    $region33: #{tpu_custom_call.1} parent=1 // pred_fallthru
      _
    // Predicated region
    $region34: #{tpu_custom_call.1} parent=1 // pred_check
      _
    $region35: #{tpu_custom_call.1} parent=1 // pred_check_branch
      %32 = sbr.rel (0) target = $region37
    $region36: #{tpu_custom_call.1} parent=1 // pred_region
      _
    $region37: #{tpu_custom_call.1} parent=1 // pred_fallthru
      _
    %v34 = vld [vmem:[%s1] sm:$0xff]
    %v35 = vld [vmem:[%s1 + $0x8] sm:$0xff]
    %v36 = vld [vmem:[%s2] sm:$0x1]
    %38 = vset.pattern.permute.xlu0 0
    %39 = vperm.xlu0 %38, %v34
    %v40 = vpop.permute.xlu0 %39
    %43 = vset.pattern.permute.xlu0 0
    %44 = vperm.xlu0 %43, %v35
    %v45 = vpop.permute.xlu0 %44
    %v47 = vperm.slane %v36, 0
    %v48 = vmul.f32 %v40, %v47
    %v49 = vmul.f32 %v45, %v47
    %v50 = vld [vmem:[%s2 + $0x1] sm:$0x1]
    %51 = vset.pattern.permute.xlu0 1
    %52 = vperm.xlu0 %51, %v34
    %v53 = vpop.permute.xlu0 %52
    %55 = vset.pattern.permute.xlu0 1
    %56 = vperm.xlu0 %55, %v35
    %v57 = vpop.permute.xlu0 %56
    %v59 = vperm.slane %v50, 0
    %v60 = vmul.f32 %v53, %v59
    %v61 = vmul.f32 %v57, %v59
    %v62 = vadd.f32 %v48, %v60
    %v63 = vadd.f32 %v49, %v61
    %v64 = vld [vmem:[%s2 + $0x2] sm:$0x1]
    %65 = vset.pattern.permute.xlu0 2
    %66 = vperm.xlu0 %65, %v34
    %v67 = vpop.permute.xlu0 %66
    %69 = vset.pattern.permute.xlu0 2
    %70 = vperm.xlu0 %69, %v35
    %v71 = vpop.permute.xlu0 %70
    %v73 = vperm.slane %v64, 0
    %v74 = vmul.f32 %v67, %v73
    %v75 = vmul.f32 %v71, %v73
    %v76 = vadd.f32 %v62, %v74
    %v77 = vadd.f32 %v63, %v75
    %v78 = vld [vmem:[%s3] sm:$0x1]
    %v80 = vperm.slane %v78, 0
    %v82 = vadd.f32 %v76, %v80
    %v83 = vadd.f32 %v77, %v80
    %v84 = vxor.u32 %v82, 2147483648
    %v85 = vxor.u32 %v83, 2147483648
    %v86 = vmul.f32 %v84, 1.442695
    %v87 = vpow.pop %v86
    %v88 = vmul.f32 %v85, 1.442695
    %v89 = vpow.pop %v88
    %v90 = vadd.f32 %v87, 1.0
    %v91 = vadd.f32 %v89, 1.0
    %v92 = vrcp.pop %v90
    %v93 = vmul.f32 %v90, %v92
    %v94 = vsub.f32 1.0, %v93
    %v95 = vmul.f32 %v92, %v94
    %v96 = vadd.f32 %v92, %v95
    %vm97 = vweird.f32 %v90
    %vm98 = vweird.f32 %v92
    %vm99 = vmor %vm97, %vm98
    %v100 = vsel %vm99, %v92, %v96
    %v101 = vand.u32 2147483647, %v90
    %vm102 = vcmp.eq.f32.partialorder %v101, 8.507059e+37
    %v103 = vand.u32 %v90, 2147483648
    %v104 = vor.u32 1.1754944e-38, %v103
    %v105 = vsel %vm102, %v104, %v100
    %v106 = vmul.f32 1.0, %v105
    %v107 = vrcp.pop %v91
    %v108 = vmul.f32 %v91, %v107
    %v109 = vsub.f32 1.0, %v108
    %v110 = vmul.f32 %v107, %v109
    %v111 = vadd.f32 %v107, %v110
    %vm112 = vweird.f32 %v91
    %vm113 = vweird.f32 %v107
    %vm114 = vmor %vm112, %vm113
    %v115 = vsel %vm114, %v107, %v111
    %v116 = vand.u32 2147483647, %v91
    %vm117 = vcmp.eq.f32.partialorder %v116, 8.507059e+37
    %v118 = vand.u32 %v91, 2147483648
    %v119 = vor.u32 1.1754944e-38, %v118
    %v120 = vsel %vm117, %v119, %v115
    %v121 = vmul.f32 1.0, %v120
    %v122 = vmul.f32 %v82, %v106
    %v123 = vmul.f32 %v83, %v121
    %v124 = vld [vmem:[%s0] sm:$0xff]
    %v125 = vld [vmem:[%s0 + $0x8] sm:$0xff]
    %v126 = vld [vmem:[%s4] sm:$0xf]
    %v127 = vld [vmem:[%s4 + $0x4] sm:$0xf]
    %v128 = vld [vmem:[%s4 + $0x8] sm:$0xf]
    %v129 = vld [vmem:[%s4 + $0xc] sm:$0xf]
    %v130 = vpack.c.bf16 %v125, %v124
    %v131 = vld [vmem:[%s5] sm:$0xf]
    %v132 = vld [vmem:[%s5 + $0x4] sm:$0xf]
    %v133 = vld [vmem:[%s5 + $0x8] sm:$0xf]
    %v134 = vld [vmem:[%s5 + $0xc] sm:$0xf]
    %v135 = vpack.c.bf16 %v123, %v122
    %v140 = vunpack.c.l.b16 %v131
    %v141 = vunpack.c.l.b16 %v132
    %v142 = vunpack.c.l.b16 %v133
    %v143 = vunpack.c.l.b16 %v134
    %v144 = vpack.c.b16 %v141, %v140
    %v145 = vpack.c.b16 %v143, %v142
    %vm146 = vcmask 130048
    %v148 = vsel %vm146, %v135, 0
    %v151 = vsel %vm146, %v144, 0
    %v154 = vsel %vm146, %v145, 0
    %156 = vmatpush.bf16.xpose.msra.mxu0 0
    %157 = vmatpush.bf16.xpose.msra.mxu0 0
    %158 = vmatpush.bf16.xpose.msra.mxu0 0
    %159 = vmatpush.bf16.xpose.msra.mxu0 0
    %160 = vmatpush.bf16.xpose.msra.mxu0 0
    %161 = vmatpush.bf16.xpose.msra.mxu0 0
    %162 = vmatpush.bf16.xpose.msra.mxu0 %v154
    %163 = vmatpush.bf16.xpose.msra.mxu0 %v151
    %164 = vmatmul.bf16.gmra.mxu0 %v148
    %v165 = vpop.f32.mrf.mxu0
    %v166 = vadd.f32 0.0, %v165
    %v167 = vpop.f32.mrf.mxu0
    %v168 = vadd.f32 0.0, %v167
    %169 = vdwg.mxu0
    %v174 = vunpack.c.l.b16 %v126
    %v175 = vunpack.c.l.b16 %v127
    %v176 = vunpack.c.l.b16 %v128
    %v177 = vunpack.c.l.b16 %v129
    %v178 = vpack.c.b16 %v175, %v174
    %v179 = vpack.c.b16 %v177, %v176
    %vm180 = vcmask 64512
    %v182 = vsel %vm180, %v130, 0
    %v185 = vsel %vm180, %v178, 0
    %v188 = vsel %vm180, %v179, 0
    %190 = vmatpush.bf16.xpose.msra.mxu0 0
    %191 = vmatpush.bf16.xpose.msra.mxu0 0
    %192 = vmatpush.bf16.xpose.msra.mxu0 0
    %193 = vmatpush.bf16.xpose.msra.mxu0 0
    %194 = vmatpush.bf16.xpose.msra.mxu0 0
    %195 = vmatpush.bf16.xpose.msra.mxu0 0
    %196 = vmatpush.bf16.xpose.msra.mxu0 %v188
    %197 = vmatpush.bf16.xpose.msra.mxu0 %v185
    %198 = vmatmul.bf16.gmra.mxu0 %v182
    %v199 = vpop.f32.mrf.mxu0
    %v200 = vadd.f32 %v166, %v199
    %v201 = vpop.f32.mrf.mxu0
    %v202 = vadd.f32 %v168, %v201
    %203 = vdwg.mxu0
    %v204 = vld [vmem:[%s6] sm:$0x1]
    %v206 = vperm.slane %v204, 0
    %v208 = vadd.f32 %v200, %v206
    %v209 = vadd.f32 %v202, %v206
    %v210 = vmax.f32 %v208, 0.0
    %v211 = vmax.f32 %v209, 0.0
    %v212 = vld [vmem:[%s7] sm:$0xf]
    %v213 = vld [vmem:[%s7 + $0x4] sm:$0xf]
    %v214 = vld [vmem:[%s7 + $0x8] sm:$0xf]
    %v215 = vld [vmem:[%s7 + $0xc] sm:$0xf]
    %v216 = vpack.c.bf16 %v211, %v210
    %v217 = vld [vmem:[%s8] sm:$0x1]
    %v219 = vperm.slane %v217, 0
    %v225 = vunpack.c.l.b16 %v212
    %v226 = vunpack.c.l.b16 %v213
    %v227 = vunpack.c.l.b16 %v214
    %v228 = vunpack.c.l.b16 %v215
    %v229 = vpack.c.b16 %v226, %v225
    %v230 = vpack.c.b16 %v228, %v227
    %vm231 = vcmask 261120
    %v233 = vsel %vm231, %v216, 0
    %v236 = vsel %vm231, %v229, 0
    %v239 = vsel %vm231, %v230, 0
    %241 = vmatpush.bf16.xpose.msra.mxu0 0
    %242 = vmatpush.bf16.xpose.msra.mxu0 0
    %243 = vmatpush.bf16.xpose.msra.mxu0 0
    %244 = vmatpush.bf16.xpose.msra.mxu0 0
    %245 = vmatpush.bf16.xpose.msra.mxu0 0
    %246 = vmatpush.bf16.xpose.msra.mxu0 0
    %247 = vmatpush.bf16.xpose.msra.mxu0 %v239
    %248 = vmatpush.bf16.xpose.msra.mxu0 %v236
    %249 = vmatmul.bf16.gmra.mxu0 %v233
    %v250 = vpop.f32.mrf.mxu0
    %v251 = vadd.f32 %v219, %v250
    %v252 = vpop.f32.mrf.mxu0
    %v253 = vadd.f32 %v219, %v252
    %254 = vdwg.mxu0
    %v255 = vmax.f32 %v251, 0.0
    %v256 = vmax.f32 %v253, 0.0
    %257 = vst.msk [vmem:[#allocation2] sm:$0xff] %vm231, %v255
    %258 = vst.msk [vmem:[#allocation2 + $0x8] sm:$0xff] %vm231, %v256
    // Predicated region
    $region38: #{tpu_custom_call.1} parent=1 // pred_check
      _
    $region39: #{tpu_custom_call.1} parent=1 // pred_check_branch
      %260 = sbr.rel (0) target = $region41
    $region40: #{tpu_custom_call.1} parent=1 // pred_region
      %262 = vsyncadd [#allocation3], 0
      %s263 = sshll.u32 [#allocation2], 4
      %s264 = int_to_ptr.vmem [resolvable:$true] %s263
      %s265 = sshll.u32 %s9, 4
      %s266 = int_to_ptr.hbm [resolvable:$true] %s265
      %271 = dma.vmem_to_hbm [thread:$0]  %s264, 256, %s266, [#allocation3], 128, 128, 8
    $region41: #{tpu_custom_call.1} parent=1 // pred_fallthru
      _
    // Predicated region
    $region42: #{tpu_custom_call.1} parent=1 // pred_check
      _
    $region43: #{tpu_custom_call.1} parent=1 // pred_check_branch
      %273 = sbr.rel (0) target = $region45
    $region44: #{tpu_custom_call.1} parent=1 // pred_region
      %275 = dma.done [#allocation3], 256
    $region45: #{tpu_custom_call.1} parent=1 // pred_fallthru
      _
    %276 = vsyncpa [#allocation3], 1

</llo_original>
